<compile_context>
chip_gen: v5e
topology: v5e:2x2
jax: 0.10.0
libtpu: 0.0.40
codegen_flags: <defaults>
</compile_context>

<pallas_src>
import functools

import jax
import jax.numpy as jnp
from jax import lax
from jax.experimental import pallas as pl
from jax.experimental.pallas import tpu as pltpu

POOL_SIZE = 3


def _avgpool_kernel(x_ref, aux_ref, o_ref, pad_ref, *, width, pad, halo):
    """One block of flattened spatial planes.

    x_ref  : (rows, N) — each row is one (b, c) plane flattened to H*W.
    aux_ref: (1 + 2*pad, N) f32 — row 0 = 1/valid_count per pixel,
             rows 1.. = lane masks for each horizontal offset dx != 0.
    o_ref  : (rows, N) output block.
    pad_ref: (rows, halo + N + halo) f32 VMEM scratch (zero halo on both ends).
    """
    rows, n = x_ref.shape

    # Build the zero halo + interior in VMEM (no padded copy in HBM).
    pad_ref[:, 0:halo] = jnp.zeros((rows, halo), jnp.float32)
    pad_ref[:, halo + n:halo + n + halo] = jnp.zeros((rows, halo), jnp.float32)
    xf = x_ref[...].astype(jnp.float32)
    pad_ref[:, halo:halo + n] = xf

    # 1) Horizontal (within-row) window sum. Lane masks zero the values that
    #    would wrap across row boundaries in the flattened layout.
    hsum = xf
    aux_row = 1
    for dx in range(-pad, pad + 1):
        if dx == 0:
            continue
        mask = aux_ref[aux_row:aux_row + 1, :]          # (1, N), broadcasts
        off = halo + dx
        hsum = hsum + pad_ref[:, off:off + n] * mask
        aux_row += 1

    # 2) Vertical window sum of the horizontal sums. The zero halo supplies
    #    the missing rows above / below the plane.
    pad_ref[:, halo:halo + n] = hsum
    acc = hsum
    for dy in range(-pad, pad + 1):
        if dy == 0:
            continue
        off = halo + dy * width
        acc = acc + pad_ref[:, off:off + n]

    # 3) count_include_pad=False -> multiply by 1 / (number of valid cells).
    o_ref[...] = (acc * aux_ref[0:1, :]).astype(o_ref.dtype)


def pooling_forward(x, pool_size=POOL_SIZE):
    """AvgPool2d(pool_size, stride=1, padding=pool_size//2, count_include_pad=False).

    x: (B, C, H, W) -> (B, C, H, W)
    """
    assert pool_size % 2 == 1, "odd pool_size required to match PyTorch 'same' padding"
    B, C, H, W = x.shape
    pad = pool_size // 2
    N = H * W
    R = B * C

    # Free reshape (NCHW is contiguous): one row per (b, c) plane.
    x_flat = x.reshape(R, N)

    # aux row 0: reciprocal of the per-pixel count of in-bounds window cells.
    ih = jnp.arange(H)
    iw = jnp.arange(W)
    ch = jnp.minimum(ih + pad, H - 1) - jnp.maximum(ih - pad, 0) + 1
    cw = jnp.minimum(iw + pad, W - 1) - jnp.maximum(iw - pad, 0) + 1
    inv_cnt = (1.0 / (ch[:, None] * cw[None, :]).astype(jnp.float32)).reshape(1, N)
    # aux rows 1..: lane masks for each horizontal offset dx != 0 (loop order
    # must match the kernel's loop order).
    aux_rows = [inv_cnt]
    for dx in range(-pad, pad + 1):
        if dx == 0:
            continue
        valid = jnp.logical_and(iw + dx >= 0, iw + dx <= W - 1).astype(jnp.float32)
        aux_rows.append(jnp.broadcast_to(valid[None, :], (H, W)).reshape(1, N))
    aux = jnp.concatenate(aux_rows, axis=0)              # (1 + 2*pad, N)

    # Halo width: covers the largest shift (pad*W + pad), rounded to a multiple
    # of 128 so the in-kernel interior stores stay lane-aligned.
    halo = ((pad * W + pad) + 127) // 128 * 128

    # Rows (planes) per grid step, sized against a conservative VMEM budget
    # (double-buffered in/out + f32 scratch + f32 intermediates); multiple of 8.
    itemsize = x.dtype.itemsize
    bytes_per_row = N * (4 * itemsize + 24) + 8 * halo
    rb = max(8, ((16 * 1024 * 1024) // bytes_per_row) // 8 * 8)
    if rb >= R:
        if R > 8:
            # Keep at least 2 parallel grid steps so v7x megacore can split them.
            rb = min(R, max(8, ((R + 1) // 2 + 7) // 8 * 8))
        else:
            rb = R

    kernel = functools.partial(_avgpool_kernel, width=W, pad=pad, halo=halo)
    out_flat = pl.pallas_call(
        kernel,
        out_shape=jax.ShapeDtypeStruct((R, N), x.dtype),
        grid_spec=pltpu.PrefetchScalarGridSpec(
            num_scalar_prefetch=0,
            grid=(pl.cdiv(R, rb),),
            in_specs=[
                pl.BlockSpec((rb, N), lambda i: (i, 0)),
                pl.BlockSpec((1 + 2 * pad, N), lambda i: (0, 0)),
            ],
            out_specs=pl.BlockSpec((rb, N), lambda i: (i, 0)),
            scratch_shapes=[pltpu.VMEM((rb, N + 2 * halo), jnp.float32)],
        ),
        compiler_params=pltpu.CompilerParams(
            dimension_semantics=("parallel",),
        ),
    )(x_flat, aux)
    return out_flat.reshape(B, C, H, W)


def _reference_avgpool(x, pool_size=POOL_SIZE):
    """Independent reference: lax.reduce_window with count_include_pad=False."""
    pad = pool_size // 2
    dims = (1, 1, pool_size, pool_size)
    strides = (1, 1, 1, 1)
    padding = ((0, 0), (0, 0), (pad, pad), (pad, pad))
    s = lax.reduce_window(x.astype(jnp.float32), 0.0, lax.add, dims, strides, padding)
    ones = jnp.ones_like(x, dtype=jnp.float32)
    cnt = lax.reduce_window(ones, 0.0, lax.add, dims, strides, padding)
    return (s / cnt).astype(x.dtype)


if __name__ == "__main__":
    key = jax.random.PRNGKey(0)
    B, C, H, W = 2, 4, 16, 16
    x = jax.random.normal(key, (B, C, H, W), dtype=jnp.float32)

    out = jax.block_until_ready(pooling_forward(x))
    ref = _reference_avgpool(x)

    assert out.shape == (B, C, H, W)
    err = jnp.max(jnp.abs(out - ref))
    assert jnp.allclose(out, ref, atol=1e-5, rtol=1e-5), f"max abs err {err}"
    print("KERNEL_OK")
</pallas_src>

<mosaic_0001>
module attributes {stable_mosaic.version = 11 : i64} {
  func.func @_avgpool_kernel(%arg0: i32, %arg1: memref<8x256xf32, #tpu.memory_space<vmem>>, %arg2: memref<3x256xf32, #tpu.memory_space<vmem>>, %arg3: memref<8x256xf32, #tpu.memory_space<vmem>>, %arg4: memref<8x512xf32, #tpu.memory_space<vmem>>) attributes {dimension_semantics = [#tpu.dimension_semantics<parallel>], iteration_bounds = array<i64: 1>, scalar_prefetch = 0 : i64, scratch_operands = 1 : i64, tpu.core_type = #tpu.core_type<tc>, window_params = [{transform_indices = @transform_0, window_bounds = array<i64: 8, 256>}, {pipeline_mode = #tpu.pipeline_mode<synchronous>, transform_indices = @transform_1, window_bounds = array<i64: 3, 256>}, {transform_indices = @transform_2, window_bounds = array<i64: 8, 256>}]} {
    %cst = arith.constant 0.000000e+00 : f32
    %0 = vector.broadcast %cst : f32 to vector<8x128xf32>
    %c0 = arith.constant 0 : index
    %c0_0 = arith.constant 0 : index
    %1 = vector.load %arg4[%c0, %c0_0] : memref<8x512xf32, #tpu.memory_space<vmem>>, vector<8x128xf32>
    tpu.vector_store %arg4[%c0, %c0_0], %0 {strides = array<i32>} : memref<8x512xf32, #tpu.memory_space<vmem>>, vector<8x128xf32>,
    %cst_1 = arith.constant 0.000000e+00 : f32
    %2 = vector.broadcast %cst_1 : f32 to vector<8x128xf32>
    %c0_2 = arith.constant 0 : index
    %c384 = arith.constant 384 : index
    %3 = vector.load %arg4[%c0_2, %c384] : memref<8x512xf32, #tpu.memory_space<vmem>>, vector<8x128xf32>
    tpu.vector_store %arg4[%c0_2, %c384], %2 {strides = array<i32>} : memref<8x512xf32, #tpu.memory_space<vmem>>, vector<8x128xf32>,
    %c0_3 = arith.constant 0 : index
    %c0_4 = arith.constant 0 : index
    %4 = vector.load %arg1[%c0_3, %c0_4] : memref<8x256xf32, #tpu.memory_space<vmem>>, vector<8x256xf32>
    %c0_5 = arith.constant 0 : index
    %c128 = arith.constant 128 : index
    %5 = vector.load %arg4[%c0_5, %c128] : memref<8x512xf32, #tpu.memory_space<vmem>>, vector<8x256xf32>
    tpu.vector_store %arg4[%c0_5, %c128], %4 {strides = array<i32>} : memref<8x512xf32, #tpu.memory_space<vmem>>, vector<8x256xf32>,
    %c1 = arith.constant 1 : index
    %c0_6 = arith.constant 0 : index
    %6 = vector.load %arg2[%c1, %c0_6] : memref<3x256xf32, #tpu.memory_space<vmem>>, vector<1x256xf32>
    %c0_7 = arith.constant 0 : index
    %c127 = arith.constant 127 : index
    %7 = vector.load %arg4[%c0_7, %c127] : memref<8x512xf32, #tpu.memory_space<vmem>>, vector<8x256xf32>
    %8 = vector.broadcast %6 : vector<1x256xf32> to vector<8x256xf32>
    %9 = arith.mulf %7, %8 : vector<8x256xf32>
    %10 = arith.addf %4, %9 : vector<8x256xf32>
    %c2 = arith.constant 2 : index
    %c0_8 = arith.constant 0 : index
    %11 = vector.load %arg2[%c2, %c0_8] : memref<3x256xf32, #tpu.memory_space<vmem>>, vector<1x256xf32>
    %c0_9 = arith.constant 0 : index
    %c129 = arith.constant 129 : index
    %12 = vector.load %arg4[%c0_9, %c129] : memref<8x512xf32, #tpu.memory_space<vmem>>, vector<8x256xf32>
    %13 = vector.broadcast %11 : vector<1x256xf32> to vector<8x256xf32>
    %14 = arith.mulf %12, %13 : vector<8x256xf32>
    %15 = arith.addf %10, %14 : vector<8x256xf32>
    %c0_10 = arith.constant 0 : index
    %c128_11 = arith.constant 128 : index
    %16 = vector.load %arg4[%c0_10, %c128_11] : memref<8x512xf32, #tpu.memory_space<vmem>>, vector<8x256xf32>
    tpu.vector_store %arg4[%c0_10, %c128_11], %15 {strides = array<i32>} : memref<8x512xf32, #tpu.memory_space<vmem>>, vector<8x256xf32>,
    %c0_12 = arith.constant 0 : index
    %c112 = arith.constant 112 : index
    %17 = vector.load %arg4[%c0_12, %c112] : memref<8x512xf32, #tpu.memory_space<vmem>>, vector<8x256xf32>
    %18 = arith.addf %15, %17 : vector<8x256xf32>
    %c0_13 = arith.constant 0 : index
    %c144 = arith.constant 144 : index
    %19 = vector.load %arg4[%c0_13, %c144] : memref<8x512xf32, #tpu.memory_space<vmem>>, vector<8x256xf32>
    %20 = arith.addf %18, %19 : vector<8x256xf32>
    %c0_14 = arith.constant 0 : index
    %c0_15 = arith.constant 0 : index
    %21 = vector.load %arg2[%c0_14, %c0_15] : memref<3x256xf32, #tpu.memory_space<vmem>>, vector<1x256xf32>
    %22 = vector.broadcast %21 : vector<1x256xf32> to vector<8x256xf32>
    %23 = arith.mulf %20, %22 : vector<8x256xf32>
    %c0_16 = arith.constant 0 : index
    %c0_17 = arith.constant 0 : index
    %24 = vector.load %arg3[%c0_16, %c0_17] : memref<8x256xf32, #tpu.memory_space<vmem>>, vector<8x256xf32>
    tpu.vector_store %arg3[%c0_16, %c0_17], %23 {strides = array<i32>} : memref<8x256xf32, #tpu.memory_space<vmem>>, vector<8x256xf32>,
    return
  }
  func.func @transform_0(%arg0: i32) -> (i32, i32) {
    %c0_i32 = arith.constant 0 : i32
    %c0_i32_0 = arith.constant 0 : i32
    return %arg0, %c0_i32 : i32, i32
  }
  func.func @transform_1(%arg0: i32) -> (i32, i32) {
    %c0_i32 = arith.constant 0 : i32
    %c0_i32_0 = arith.constant 0 : i32
    %c0_i32_1 = arith.constant 0 : i32
    return %c0_i32, %c0_i32_0 : i32, i32
  }
  func.func @transform_2(%arg0: i32) -> (i32, i32) {
    %c0_i32 = arith.constant 0 : i32
    %c0_i32_0 = arith.constant 0 : i32
    return %arg0, %c0_i32 : i32, i32
  }
}

</mosaic_0001>

<llo_original>
// kernel: tpu_custom_call.1
$region0: #{tpu_custom_call.1}
  #allocation0 [shape = 'u32[]', space=smem, size = 0x4, offset = 0x4, fixed_abs, tag = 'smem constant byte address 0x4 - core index']
  #allocation1 [shape = 'u32[72,128]{1,0:T(1,128)}', space=vmem, size = 0x9000, scoped, tag = 'internal scratch']
  #allocation2 [shape = 'f32[8,512]{1,0:T(8,128)}', space=vmem, size = 0x4000, scoped, tag = 'scratch operand']
  %s0 = inlined_call_operand.hbm [shape: f32[8,256], index: 0, kind: input, shape index: {}]
  %s1 = inlined_call_operand.hbm [shape: f32[3,256], index: 1, kind: input, shape index: {}]
  %s2 = inlined_call_operand.hbm [shape: f32[8,256], index: 2, kind: output, shape index: {}]
  %s3 = sld [smem:[#allocation0]]
  $region26: #{tpu_custom_call.1} parent=0
    _
  %s5 = ssub.s32 1, %s3
  %s6 = scalar_select 0, %s5, %s3
  $region1: #{tpu_custom_call.1} parent=0
    #allocation3 [shape = 'u8[8192]{0}', space=vmem, size = 0x2000, scoped, tag = 'input window, operand 0, single buffered']
    #allocation4 [shape = 's32[1]{0}', space=sflag, size = 0x4, scoped, tag = 'scoped memory for tpu_custom_call.1']
    #allocation5 [shape = 's32[1]{0}', space=sflag, size = 0x4, scoped, tag = 'scoped memory for tpu_custom_call.1']
    #allocation6 [shape = 'u8[4096]{0}', space=vmem, size = 0x1000, scoped, tag = 'input window, operand 1, single buffered']
    #allocation7 [shape = 's32[1]{0}', space=sflag, size = 0x4, scoped, tag = 'scoped memory for tpu_custom_call.1']
    #allocation8 [shape = 'u8[8192]{0}', space=vmem, size = 0x2000, scoped, tag = 'output window, operand 0, single buffered']
    %7 = vsyncpa [#allocation4], 0
    %8 = vsyncpa [#allocation7], 0
    %9 = vsyncpa [#allocation5], 0
    // Predicated region
    $region2: #{tpu_custom_call.1} parent=1 // pred_check
      _
    $region3: #{tpu_custom_call.1} parent=1 // pred_check_branch
      %11 = sbr.rel (0) target = $region5
    $region4: #{tpu_custom_call.1} parent=1 // pred_region
      %13 = vsyncadd [#allocation4], 0
      %s15 = sshll.u32 %s0, 4
      %s16 = int_to_ptr.hbm [resolvable:$true] %s15
      %s17 = sshll.u32 [#allocation3], 4
      %s18 = int_to_ptr.vmem [resolvable:$true] %s17
      %20 = dma.hbm_to_vmem [thread:$0]  %s16, 256, %s18, [#allocation4]
    $region5: #{tpu_custom_call.1} parent=1 // pred_fallthru
      _
    // Predicated region
    $region6: #{tpu_custom_call.1} parent=1 // pred_check
      _
    $region7: #{tpu_custom_call.1} parent=1 // pred_check_branch
      %22 = sbr.rel (0) target = $region9
    $region8: #{tpu_custom_call.1} parent=1 // pred_region
      %24 = vsyncadd [#allocation7], 0
      %s26 = sshll.u32 %s1, 4
      %s27 = int_to_ptr.hbm [resolvable:$true] %s26
      %s28 = sshll.u32 [#allocation6], 4
      %s29 = int_to_ptr.vmem [resolvable:$true] %s28
      %31 = dma.hbm_to_vmem [thread:$0]  %s27, 128, %s29, [#allocation7]
    $region9: #{tpu_custom_call.1} parent=1 // pred_fallthru
      _
    // Predicated region
    $region10: #{tpu_custom_call.1} parent=1 // pred_check
      _
    $region11: #{tpu_custom_call.1} parent=1 // pred_check_branch
      %33 = sbr.rel (0) target = $region13
    $region12: #{tpu_custom_call.1} parent=1 // pred_region
      %35 = dma.done [#allocation4], 256
    $region13: #{tpu_custom_call.1} parent=1 // pred_fallthru
      _
    // Predicated region
    $region14: #{tpu_custom_call.1} parent=1 // pred_check
      _
    $region15: #{tpu_custom_call.1} parent=1 // pred_check_branch
      %37 = sbr.rel (0) target = $region17
    $region16: #{tpu_custom_call.1} parent=1 // pred_region
      %39 = dma.done [#allocation7], 128
    $region17: #{tpu_custom_call.1} parent=1 // pred_fallthru
      _
    %40 = vst [vmem:[#allocation2] sm:$0xff] 0.0
    %41 = vst [vmem:[#allocation2 + $0x18] sm:$0xff] 0.0
    %v42 = vld [vmem:[#allocation3] sm:$0xff]
    %v43 = vld [vmem:[#allocation3 + $0x8] sm:$0xff]
    %44 = vst [vmem:[#allocation2 + $0x8] sm:$0xff] %v42
    %45 = vst [vmem:[#allocation2 + $0x10] sm:$0xff] %v43
    %s46 = scalar_lea.vmem [#allocation6], 1
    %v47 = vld [vmem:[%s46] ss:$4 sm:$0x3]
    %v48 = vld [vmem:[#allocation2] sm:$0xff]
    %v49 = vld [vmem:[#allocation2 + $0x8] sm:$0xff]
    %v50 = vld [vmem:[#allocation2 + $0x10] sm:$0xff]
    %v52 = vperm.slane %v47, 0
    %v53 = vperm.slane %v47, 1
    %54 = vrot.lane.b32.xlu0 %v52, 127
    %v55 = vpop.permute.xlu0 %54
    %56 = vrot.lane.b32.xlu0 %v53, 127
    %v57 = vpop.permute.xlu0 %56
    %vm58 = vcmask 1039360
    %v59 = vsel %vm58, %v55, %v57
    %v63 = vmul.f32 %v48, %v55
    %v64 = vmul.f32 %v49, %v59
    %v65 = vmul.f32 %v50, %v57
    %69 = vrot.lane.b32.xlu0 %v63, 1
    %v70 = vpop.permute.xlu0 %69
    %71 = vrot.lane.b32.xlu0 %v64, 1
    %v72 = vpop.permute.xlu0 %71
    %73 = vrot.lane.b32.xlu0 %v65, 1
    %v74 = vpop.permute.xlu0 %73
    %vm75 = vcmask 7168
    %v76 = vsel %vm75, %v70, %v72
    %v77 = vsel %vm75, %v72, %v74
    %v80 = vadd.f32 %v42, %v76
    %v81 = vadd.f32 %v43, %v77
    %s82 = scalar_lea.vmem [#allocation6], 2
    %v83 = vld [vmem:[%s82] ss:$4 sm:$0x3]
    %v84 = vld [vmem:[#allocation2 + $0x8] sm:$0xff]
    %v85 = vld [vmem:[#allocation2 + $0x10] sm:$0xff]
    %v86 = vld [vmem:[#allocation2 + $0x18] sm:$0xff]
    %v88 = vperm.slane %v83, 0
    %v89 = vperm.slane %v83, 1
    %90 = vrot.lane.b32.xlu0 %v88, 1
    %v91 = vpop.permute.xlu0 %90
    %92 = vrot.lane.b32.xlu0 %v89, 1
    %v93 = vpop.permute.xlu0 %92
    %v94 = vsel %vm75, %v91, %v93
    %v98 = vmul.f32 %v84, %v91
    %v99 = vmul.f32 %v85, %v94
    %v100 = vmul.f32 %v86, %v93
    %104 = vrot.lane.b32.xlu0 %v98, 127
    %v105 = vpop.permute.xlu0 %104
    %106 = vrot.lane.b32.xlu0 %v99, 127
    %v107 = vpop.permute.xlu0 %106
    %108 = vrot.lane.b32.xlu0 %v100, 127
    %v109 = vpop.permute.xlu0 %108
    %v110 = vsel %vm58, %v105, %v107
    %v111 = vsel %vm58, %v107, %v109
    %v114 = vadd.f32 %v80, %v110
    %v115 = vadd.f32 %v81, %v111
    %116 = vst [vmem:[#allocation2 + $0x8] sm:$0xff] %v114
    %117 = vst [vmem:[#allocation2 + $0x10] sm:$0xff] %v115
    %v118 = vld [vmem:[#allocation2] sm:$0xff]
    %v119 = vld [vmem:[#allocation2 + $0x8] sm:$0xff]
    %v120 = vld [vmem:[#allocation2 + $0x10] sm:$0xff]
    %124 = vrot.lane.b32.xlu0 %v118, 16
    %v125 = vpop.permute.xlu0 %124
    %126 = vrot.lane.b32.xlu0 %v119, 16
    %v127 = vpop.permute.xlu0 %126
    %128 = vrot.lane.b32.xlu0 %v120, 16
    %v129 = vpop.permute.xlu0 %128
    %vm130 = vcmask 130048
    %v131 = vsel %vm130, %v125, %v127
    %v132 = vsel %vm130, %v127, %v129
    %v135 = vadd.f32 %v114, %v131
    %v136 = vadd.f32 %v115, %v132
    %v137 = vld [vmem:[#allocation2 + $0x8] sm:$0xff]
    %v138 = vld [vmem:[#allocation2 + $0x10] sm:$0xff]
    %v139 = vld [vmem:[#allocation2 + $0x18] sm:$0xff]
    %143 = vrot.lane.b32.xlu0 %v137, 112
    %v144 = vpop.permute.xlu0 %143
    %145 = vrot.lane.b32.xlu0 %v138, 112
    %v146 = vpop.permute.xlu0 %145
    %147 = vrot.lane.b32.xlu0 %v139, 112
    %v148 = vpop.permute.xlu0 %147
    %vm149 = vcmask 916480
    %v150 = vsel %vm149, %v144, %v146
    %v151 = vsel %vm149, %v146, %v148
    %v154 = vadd.f32 %v135, %v150
    %v155 = vadd.f32 %v136, %v151
    %v156 = vld [vmem:[#allocation6] ss:$4 sm:$0x3]
    %v158 = vperm.slane %v156, 0
    %v159 = vperm.slane %v156, 1
    %v162 = vmul.f32 %v154, %v158
    %v163 = vmul.f32 %v155, %v159
    %164 = vst [vmem:[#allocation8] sm:$0xff] %v162
    %165 = vst [vmem:[#allocation8 + $0x8] sm:$0xff] %v163
    // Predicated region
    $region18: #{tpu_custom_call.1} parent=1 // pred_check
      _
    $region19: #{tpu_custom_call.1} parent=1 // pred_check_branch
      %167 = sbr.rel (0) target = $region21
    $region20: #{tpu_custom_call.1} parent=1 // pred_region
      %169 = vsyncadd [#allocation5], 0
      %s171 = sshll.u32 [#allocation8], 4
      %s172 = int_to_ptr.vmem [resolvable:$true] %s171
      %s173 = sshll.u32 %s2, 4
      %s174 = int_to_ptr.hbm [resolvable:$true] %s173
      %176 = dma.vmem_to_hbm [thread:$0]  %s172, 256, %s174, [#allocation5]
    $region21: #{tpu_custom_call.1} parent=1 // pred_fallthru
      _
    // Predicated region
    $region22: #{tpu_custom_call.1} parent=1 // pred_check
      _
    $region23: #{tpu_custom_call.1} parent=1 // pred_check_branch
      %178 = sbr.rel (0) target = $region25
    $region24: #{tpu_custom_call.1} parent=1 // pred_region
      %180 = dma.done [#allocation5], 256
    $region25: #{tpu_custom_call.1} parent=1 // pred_fallthru
      _
    %181 = vsyncpa [#allocation4], 1
    %182 = vsyncpa [#allocation7], 1
    %183 = vsyncpa [#allocation5], 1

</llo_original>
